<compile_context>
chip_gen: v5e
topology: v5e:2x2
jax: 0.10.0
libtpu: 0.0.40
codegen_flags: <defaults>
</compile_context>

<pallas_src>
import jax
import jax.numpy as jnp
from jax.experimental import pallas as pl
from jax.experimental.pallas import tpu as pltpu

LANE = 128
SUBLANE = 8
DROP_P = 0.2
# dropout decided by signed-int32 compare on 31 random bits: drop iff r < p * 2^31
DROP_THRESHOLD = int(round(DROP_P * (1 << 31)))


def _round_up(n, m):
    return ((n + m - 1) // m) * m


def mlp_kernel(x_ref, bits_ref,
               ws_ref, bs_ref,
               w2_ref, b2_ref,
               w3_ref, b3_ref,
               we_ref, be_ref,
               o_ref):
    # ---- fc_s + relu ----
    h = jnp.dot(x_ref[...], ws_ref[...], preferred_element_type=jnp.float32)
    h = jnp.maximum(h + bs_ref[...], 0.0)

    # ---- fc2 + relu ----
    h = jnp.dot(h, w2_ref[...], preferred_element_type=jnp.float32)
    h = jnp.maximum(h + b2_ref[...], 0.0)

    # ---- dropout(p=0.2), training mode (matches F.dropout default) ----
    # 1/(1-p) rescale is folded into w3, so only mask + select remain.
    keep = bits_ref[...] >= DROP_THRESHOLD
    h = jnp.where(keep, h, 0.0)

    # ---- fc3 + relu (w3 pre-scaled by 1/(1-p)) ----
    h = jnp.dot(h, w3_ref[...], preferred_element_type=jnp.float32)
    h = jnp.maximum(h + b3_ref[...], 0.0)

    # ---- fc_e (no activation) ----
    y = jnp.dot(h, we_ref[...], preferred_element_type=jnp.float32)
    o_ref[...] = y + be_ref[...]


def net_forward(x, params, output_size, dropout_key):
    """x: [batch, input_size] float32; params from init_params (lane-padded)."""
    batch, in_features = x.shape
    in_p, h_p = params["ws"].shape
    o_p = params["we"].shape[1]

    # batch tile: multiple of 8 sublanes, capped at 256 rows per grid step
    tb = min(256, _round_up(batch, SUBLANE))
    batch_p = _round_up(batch, tb)

    # lane/batch-pad the activations; pad columns are zero so they contribute 0
    x_p = jnp.zeros((batch_p, in_p), jnp.float32).at[:batch, :in_features].set(x)

    # dropout randomness generated outside the kernel (portable: TPU + interpret)
    bits = (jax.random.bits(dropout_key, (batch_p, h_p), dtype=jnp.uint32) >> 1
            ).astype(jnp.int32)

    grid = (batch_p // tb,)

    def row_spec(feat):   # batch-tiled activations / output
        return pl.BlockSpec((tb, feat), lambda i: (i, 0))

    def full_spec(shape):  # weights / biases stay resident across grid steps
        return pl.BlockSpec(shape, lambda i: (0, 0))

    flops = 2 * batch_p * (in_p * h_p + 2 * h_p * h_p + h_p * o_p)
    param_elems = sum(int(params[k].size) for k in
                      ("ws", "bs", "w2", "b2", "w3", "b3", "we", "be"))
    bytes_accessed = 4 * (int(x_p.size) + int(bits.size) + batch_p * o_p + param_elems)

    out_p = pl.pallas_call(
        mlp_kernel,
        out_shape=jax.ShapeDtypeStruct((batch_p, o_p), jnp.float32),
        grid=grid,
        in_specs=[row_spec(in_p),                        # x tile
                  row_spec(h_p),                         # dropout bits tile
                  full_spec((in_p, h_p)), full_spec((1, h_p)),   # fc_s
                  full_spec((h_p, h_p)), full_spec((1, h_p)),    # fc2
                  full_spec((h_p, h_p)), full_spec((1, h_p)),    # fc3 (scaled)
                  full_spec((h_p, o_p)), full_spec((1, o_p))],   # fc_e
        out_specs=row_spec(o_p),
        compiler_params=pltpu.CompilerParams(
            dimension_semantics=("parallel",)),
        cost_estimate=pl.CostEstimate(
            flops=flops, transcendentals=0, bytes_accessed=bytes_accessed),
    )(x_p, bits,
      params["ws"], params["bs"],
      params["w2"], params["b2"],
      params["w3"], params["b3"],
      params["we"], params["be"])

    return out_p[:batch, :output_size]


def init_params(key, input_size, output_size, unit_size):
    """Mimics nn.Linear init U(-1/sqrt(fan_in), 1/sqrt(fan_in)).
    Weights stored as [in, out], zero-padded to lane width (128); the dropout
    1/(1-p) rescale is folded into w3 once here (one-time prep, not per-call)."""
    def linear(k, fan_in, fan_out):
        kw, kb = jax.random.split(k)
        bound = 1.0 / float(fan_in) ** 0.5
        w = jax.random.uniform(kw, (fan_in, fan_out), jnp.float32, -bound, bound)
        b = jax.random.uniform(kb, (1, fan_out), jnp.float32, -bound, bound)
        return w, b

    k1, k2, k3, k4 = jax.random.split(key, 4)
    ws, bs = linear(k1, input_size, unit_size)
    w2, b2 = linear(k2, unit_size, unit_size)
    w3, b3 = linear(k3, unit_size, unit_size)
    we, be = linear(k4, unit_size, output_size)

    w3 = w3 * (1.0 / (1.0 - DROP_P))   # fold dropout rescale into fc3 weights

    in_p = _round_up(input_size, LANE)
    h_p = _round_up(unit_size, LANE)
    o_p = _round_up(output_size, LANE)

    def pad2(a, rows, cols):
        return jnp.pad(a, ((0, rows - a.shape[0]), (0, cols - a.shape[1])))

    return {
        "ws": pad2(ws, in_p, h_p), "bs": pad2(bs, 1, h_p),
        "w2": pad2(w2, h_p, h_p), "b2": pad2(b2, 1, h_p),
        "w3": pad2(w3, h_p, h_p), "b3": pad2(b3, 1, h_p),
        "we": pad2(we, h_p, o_p), "be": pad2(be, 1, o_p),
    }


if __name__ == "__main__":
    input_size, output_size, unit_size = 32, 16, 64
    batch = 8

    key = jax.random.PRNGKey(0)
    kx, kp, kd = jax.random.split(key, 3)

    x = jax.random.normal(kx, (batch, input_size), dtype=jnp.float32)
    params = init_params(kp, input_size, output_size, unit_size)

    out = net_forward(x, params, output_size, kd)
    out = jax.block_until_ready(out)

    assert out.shape == (batch, output_size)
    assert bool(jnp.all(jnp.isfinite(out)))
    print("KERNEL_OK")
</pallas_src>

<mosaic_0001>
module attributes {stable_mosaic.version = 11 : i64} {
  func.func @mlp_kernel(%arg0: i32, %arg1: memref<8x128xf32, #tpu.memory_space<vmem>>, %arg2: memref<8x128xi32, #tpu.memory_space<vmem>>, %arg3: memref<128x128xf32, #tpu.memory_space<vmem>>, %arg4: memref<1x128xf32, #tpu.memory_space<vmem>>, %arg5: memref<128x128xf32, #tpu.memory_space<vmem>>, %arg6: memref<1x128xf32, #tpu.memory_space<vmem>>, %arg7: memref<128x128xf32, #tpu.memory_space<vmem>>, %arg8: memref<1x128xf32, #tpu.memory_space<vmem>>, %arg9: memref<128x128xf32, #tpu.memory_space<vmem>>, %arg10: memref<1x128xf32, #tpu.memory_space<vmem>>, %arg11: memref<8x128xf32, #tpu.memory_space<vmem>>) attributes {dimension_semantics = [#tpu.dimension_semantics<parallel>], iteration_bounds = array<i64: 1>, scalar_prefetch = 0 : i64, scratch_operands = 0 : i64, tpu.core_type = #tpu.core_type<tc>, window_params = [{transform_indices = @transform_0, window_bounds = array<i64: 8, 128>}, {transform_indices = @transform_1, window_bounds = array<i64: 8, 128>}, {pipeline_mode = #tpu.pipeline_mode<synchronous>, transform_indices = @transform_2, window_bounds = array<i64: 128, 128>}, {pipeline_mode = #tpu.pipeline_mode<synchronous>, transform_indices = @transform_3, window_bounds = array<i64: 1, 128>}, {pipeline_mode = #tpu.pipeline_mode<synchronous>, transform_indices = @transform_4, window_bounds = array<i64: 128, 128>}, {pipeline_mode = #tpu.pipeline_mode<synchronous>, transform_indices = @transform_5, window_bounds = array<i64: 1, 128>}, {pipeline_mode = #tpu.pipeline_mode<synchronous>, transform_indices = @transform_6, window_bounds = array<i64: 128, 128>}, {pipeline_mode = #tpu.pipeline_mode<synchronous>, transform_indices = @transform_7, window_bounds = array<i64: 1, 128>}, {pipeline_mode = #tpu.pipeline_mode<synchronous>, transform_indices = @transform_8, window_bounds = array<i64: 128, 128>}, {pipeline_mode = #tpu.pipeline_mode<synchronous>, transform_indices = @transform_9, window_bounds = array<i64: 1, 128>}, {transform_indices = @transform_10, window_bounds = array<i64: 8, 128>}]} {
    %c0 = arith.constant 0 : index
    %c0_0 = arith.constant 0 : index
    %0 = vector.load %arg1[%c0, %c0_0] : memref<8x128xf32, #tpu.memory_space<vmem>>, vector<8x128xf32>
    %c0_1 = arith.constant 0 : index
    %c0_2 = arith.constant 0 : index
    %1 = vector.load %arg3[%c0_1, %c0_2] : memref<128x128xf32, #tpu.memory_space<vmem>>, vector<128x128xf32>
    %cst = arith.constant dense<0.000000e+00> : vector<8x128xf32>
    %2 = tpu.matmul %0, %1, %cst {dimension_numbers = #tpu.dot_dimension_numbers<[1], [0], [0], [1], [0, 0, 1, 1], [], []>} : vector<8x128xf32>, vector<128x128xf32>, vector<8x128xf32> -> vector<8x128xf32>
    %c0_3 = arith.constant 0 : index
    %c0_4 = arith.constant 0 : index
    %3 = vector.load %arg4[%c0_3, %c0_4] : memref<1x128xf32, #tpu.memory_space<vmem>>, vector<1x128xf32>
    %4 = vector.broadcast %3 : vector<1x128xf32> to vector<8x128xf32>
    %5 = arith.addf %2, %4 : vector<8x128xf32>
    %cst_5 = arith.constant 0.000000e+00 : f32
    %6 = vector.broadcast %cst_5 : f32 to vector<8x128xf32>
    %7 = arith.maximumf %5, %6 : vector<8x128xf32>
    %c0_6 = arith.constant 0 : index
    %c0_7 = arith.constant 0 : index
    %8 = vector.load %arg5[%c0_6, %c0_7] : memref<128x128xf32, #tpu.memory_space<vmem>>, vector<128x128xf32>
    %cst_8 = arith.constant dense<0.000000e+00> : vector<8x128xf32>
    %9 = tpu.matmul %7, %8, %cst_8 {dimension_numbers = #tpu.dot_dimension_numbers<[1], [0], [0], [1], [0, 0, 1, 1], [], []>} : vector<8x128xf32>, vector<128x128xf32>, vector<8x128xf32> -> vector<8x128xf32>
    %c0_9 = arith.constant 0 : index
    %c0_10 = arith.constant 0 : index
    %10 = vector.load %arg6[%c0_9, %c0_10] : memref<1x128xf32, #tpu.memory_space<vmem>>, vector<1x128xf32>
    %11 = vector.broadcast %10 : vector<1x128xf32> to vector<8x128xf32>
    %12 = arith.addf %9, %11 : vector<8x128xf32>
    %cst_11 = arith.constant 0.000000e+00 : f32
    %13 = vector.broadcast %cst_11 : f32 to vector<8x128xf32>
    %14 = arith.maximumf %12, %13 : vector<8x128xf32>
    %c0_12 = arith.constant 0 : index
    %c0_13 = arith.constant 0 : index
    %15 = vector.load %arg2[%c0_12, %c0_13] : memref<8x128xi32, #tpu.memory_space<vmem>>, vector<8x128xi32>
    %c429496730_i32 = arith.constant 429496730 : i32
    %16 = vector.broadcast %c429496730_i32 : i32 to vector<8x128xi32>
    %17 = arith.cmpi sge, %15, %16 : vector<8x128xi32>
    %cst_14 = arith.constant 0.000000e+00 : f32
    %18 = vector.broadcast %cst_14 : f32 to vector<8x128xf32>
    %19 = arith.select %17, %14, %18 : vector<8x128xi1>, vector<8x128xf32>
    %c0_15 = arith.constant 0 : index
    %c0_16 = arith.constant 0 : index
    %20 = vector.load %arg7[%c0_15, %c0_16] : memref<128x128xf32, #tpu.memory_space<vmem>>, vector<128x128xf32>
    %cst_17 = arith.constant dense<0.000000e+00> : vector<8x128xf32>
    %21 = tpu.matmul %19, %20, %cst_17 {dimension_numbers = #tpu.dot_dimension_numbers<[1], [0], [0], [1], [0, 0, 1, 1], [], []>} : vector<8x128xf32>, vector<128x128xf32>, vector<8x128xf32> -> vector<8x128xf32>
    %c0_18 = arith.constant 0 : index
    %c0_19 = arith.constant 0 : index
    %22 = vector.load %arg8[%c0_18, %c0_19] : memref<1x128xf32, #tpu.memory_space<vmem>>, vector<1x128xf32>
    %23 = vector.broadcast %22 : vector<1x128xf32> to vector<8x128xf32>
    %24 = arith.addf %21, %23 : vector<8x128xf32>
    %cst_20 = arith.constant 0.000000e+00 : f32
    %25 = vector.broadcast %cst_20 : f32 to vector<8x128xf32>
    %26 = arith.maximumf %24, %25 : vector<8x128xf32>
    %c0_21 = arith.constant 0 : index
    %c0_22 = arith.constant 0 : index
    %27 = vector.load %arg9[%c0_21, %c0_22] : memref<128x128xf32, #tpu.memory_space<vmem>>, vector<128x128xf32>
    %cst_23 = arith.constant dense<0.000000e+00> : vector<8x128xf32>
    %28 = tpu.matmul %26, %27, %cst_23 {dimension_numbers = #tpu.dot_dimension_numbers<[1], [0], [0], [1], [0, 0, 1, 1], [], []>} : vector<8x128xf32>, vector<128x128xf32>, vector<8x128xf32> -> vector<8x128xf32>
    %c0_24 = arith.constant 0 : index
    %c0_25 = arith.constant 0 : index
    %29 = vector.load %arg10[%c0_24, %c0_25] : memref<1x128xf32, #tpu.memory_space<vmem>>, vector<1x128xf32>
    %30 = vector.broadcast %29 : vector<1x128xf32> to vector<8x128xf32>
    %31 = arith.addf %28, %30 : vector<8x128xf32>
    %c0_26 = arith.constant 0 : index
    %c0_27 = arith.constant 0 : index
    %32 = vector.load %arg11[%c0_26, %c0_27] : memref<8x128xf32, #tpu.memory_space<vmem>>, vector<8x128xf32>
    tpu.vector_store %arg11[%c0_26, %c0_27], %31 {strides = array<i32>} : memref<8x128xf32, #tpu.memory_space<vmem>>, vector<8x128xf32>,
    return
  }
  func.func @transform_0(%arg0: i32) -> (i32, i32) {
    %c0_i32 = arith.constant 0 : i32
    %c0_i32_0 = arith.constant 0 : i32
    return %arg0, %c0_i32 : i32, i32
  }
  func.func @transform_1(%arg0: i32) -> (i32, i32) {
    %c0_i32 = arith.constant 0 : i32
    %c0_i32_0 = arith.constant 0 : i32
    return %arg0, %c0_i32 : i32, i32
  }
  func.func @transform_2(%arg0: i32) -> (i32, i32) {
    %c0_i32 = arith.constant 0 : i32
    %c0_i32_0 = arith.constant 0 : i32
    %c0_i32_1 = arith.constant 0 : i32
    return %c0_i32, %c0_i32_0 : i32, i32
  }
  func.func @transform_3(%arg0: i32) -> (i32, i32) {
    %c0_i32 = arith.constant 0 : i32
    %c0_i32_0 = arith.constant 0 : i32
    %c0_i32_1 = arith.constant 0 : i32
    return %c0_i32, %c0_i32_0 : i32, i32
  }
  func.func @transform_4(%arg0: i32) -> (i32, i32) {
    %c0_i32 = arith.constant 0 : i32
    %c0_i32_0 = arith.constant 0 : i32
    %c0_i32_1 = arith.constant 0 : i32
    return %c0_i32, %c0_i32_0 : i32, i32
  }
  func.func @transform_5(%arg0: i32) -> (i32, i32) {
    %c0_i32 = arith.constant 0 : i32
    %c0_i32_0 = arith.constant 0 : i32
    %c0_i32_1 = arith.constant 0 : i32
    return %c0_i32, %c0_i32_0 : i32, i32
  }
  func.func @transform_6(%arg0: i32) -> (i32, i32) {
    %c0_i32 = arith.constant 0 : i32
    %c0_i32_0 = arith.constant 0 : i32
    %c0_i32_1 = arith.constant 0 : i32
    return %c0_i32, %c0_i32_0 : i32, i32
  }
  func.func @transform_7(%arg0: i32) -> (i32, i32) {
    %c0_i32 = arith.constant 0 : i32
    %c0_i32_0 = arith.constant 0 : i32
    %c0_i32_1 = arith.constant 0 : i32
    return %c0_i32, %c0_i32_0 : i32, i32
  }
  func.func @transform_8(%arg0: i32) -> (i32, i32) {
    %c0_i32 = arith.constant 0 : i32
    %c0_i32_0 = arith.constant 0 : i32
    %c0_i32_1 = arith.constant 0 : i32
    return %c0_i32, %c0_i32_0 : i32, i32
  }
  func.func @transform_9(%arg0: i32) -> (i32, i32) {
    %c0_i32 = arith.constant 0 : i32
    %c0_i32_0 = arith.constant 0 : i32
    %c0_i32_1 = arith.constant 0 : i32
    return %c0_i32, %c0_i32_0 : i32, i32
  }
  func.func @transform_10(%arg0: i32) -> (i32, i32) {
    %c0_i32 = arith.constant 0 : i32
    %c0_i32_0 = arith.constant 0 : i32
    return %arg0, %c0_i32 : i32, i32
  }
}

</mosaic_0001>

<llo_original>
// kernel: tpu_custom_call.1
$region0: #{tpu_custom_call.1}
  #allocation0 [shape = 'u32[]', space=smem, size = 0x4, offset = 0x4, fixed_abs, tag = 'smem constant byte address 0x4 - core index']
  #allocation1 [shape = 'u32[72,128]{1,0:T(1,128)}', space=vmem, size = 0x9000, scoped, tag = 'internal scratch']
  %s0 = inlined_call_operand.hbm [shape: f32[8,128], index: 0, kind: input, shape index: {}]
  %s1 = inlined_call_operand.hbm [shape: s32[8,128], index: 1, kind: input, shape index: {}]
  %s2 = inlined_call_operand.hbm [shape: f32[128,128], index: 2, kind: input, shape index: {}]
  %s3 = inlined_call_operand.vmem [shape: f32[1,128], index: 3, kind: input, shape index: {}]
  %s4 = inlined_call_operand.hbm [shape: f32[128,128], index: 4, kind: input, shape index: {}]
  %s5 = inlined_call_operand.vmem [shape: f32[1,128], index: 5, kind: input, shape index: {}]
  %s6 = inlined_call_operand.hbm [shape: f32[128,128], index: 6, kind: input, shape index: {}]
  %s7 = inlined_call_operand.vmem [shape: f32[1,128], index: 7, kind: input, shape index: {}]
  %s8 = inlined_call_operand.hbm [shape: f32[128,128], index: 8, kind: input, shape index: {}]
  %s9 = inlined_call_operand.vmem [shape: f32[1,128], index: 9, kind: input, shape index: {}]
  %s10 = inlined_call_operand.hbm [shape: f32[8,128], index: 10, kind: output, shape index: {}]
  %s11 = sld [smem:[#allocation0]]
  $region74: #{tpu_custom_call.1} parent=0
    _
  %s13 = ssub.s32 1, %s11
  %s14 = scalar_select 0, %s13, %s11
  $region1: #{tpu_custom_call.1} parent=0
    #allocation2 [shape = 'u8[4096]{0}', space=vmem, size = 0x1000, scoped, tag = 'input window, operand 0, single buffered']
    #allocation3 [shape = 's32[1]{0}', space=sflag, size = 0x4, scoped, tag = 'scoped memory for tpu_custom_call.1']
    #allocation4 [shape = 's32[1]{0}', space=sflag, size = 0x4, scoped, tag = 'scoped memory for tpu_custom_call.1']
    #allocation5 [shape = 'u8[4096]{0}', space=vmem, size = 0x1000, scoped, tag = 'input window, operand 1, single buffered']
    #allocation6 [shape = 's32[1]{0}', space=sflag, size = 0x4, scoped, tag = 'scoped memory for tpu_custom_call.1']
    #allocation7 [shape = 'u8[65536]{0}', space=vmem, size = 0x10000, scoped, tag = 'input window, operand 2, single buffered']
    #allocation8 [shape = 'u8[65536]{0}', space=vmem, size = 0x10000, scoped, tag = 'input window, operand 4, single buffered']
    #allocation9 [shape = 's32[1]{0}', space=sflag, size = 0x4, scoped, tag = 'scoped memory for tpu_custom_call.1']
    #allocation10 [shape = 'u8[65536]{0}', space=vmem, size = 0x10000, scoped, tag = 'input window, operand 6, single buffered']
    #allocation11 [shape = 'u8[65536]{0}', space=vmem, size = 0x10000, scoped, tag = 'input window, operand 8, single buffered']
    #allocation12 [shape = 's32[1]{0}', space=sflag, size = 0x4, scoped, tag = 'scoped memory for tpu_custom_call.1']
    #allocation13 [shape = 'u8[4096]{0}', space=vmem, size = 0x1000, scoped, tag = 'output window, operand 0, single buffered']
    %15 = vsyncpa [#allocation3], 0
    %16 = vsyncpa [#allocation6], 0
    %17 = vsyncpa [#allocation9], 0
    %18 = vsyncpa [#allocation12], 0
    %19 = vsyncpa [#allocation4], 0
    // Predicated region
    $region2: #{tpu_custom_call.1} parent=1 // pred_check
      _
    $region3: #{tpu_custom_call.1} parent=1 // pred_check_branch
      %21 = sbr.rel (0) target = $region5
    $region4: #{tpu_custom_call.1} parent=1 // pred_region
      %23 = vsyncadd [#allocation3], 0
      %s25 = sshll.u32 %s0, 4
      %s26 = int_to_ptr.hbm [resolvable:$true] %s25
      %s27 = sshll.u32 [#allocation2], 4
      %s28 = int_to_ptr.vmem [resolvable:$true] %s27
      %30 = dma.hbm_to_vmem [thread:$0]  %s26, 128, %s28, [#allocation3]
    $region5: #{tpu_custom_call.1} parent=1 // pred_fallthru
      _
    // Predicated region
    $region6: #{tpu_custom_call.1} parent=1 // pred_check
      _
    $region7: #{tpu_custom_call.1} parent=1 // pred_check_branch
      %32 = sbr.rel (0) target = $region9
    $region8: #{tpu_custom_call.1} parent=1 // pred_region
      %34 = vsyncadd [#allocation6], 0
      %s36 = sshll.u32 %s1, 4
      %s37 = int_to_ptr.hbm [resolvable:$true] %s36
      %s38 = sshll.u32 [#allocation5], 4
      %s39 = int_to_ptr.vmem [resolvable:$true] %s38
      %41 = dma.hbm_to_vmem [thread:$0]  %s37, 128, %s39, [#allocation6]
    $region9: #{tpu_custom_call.1} parent=1 // pred_fallthru
      _
    // Predicated region
    $region10: #{tpu_custom_call.1} parent=1 // pred_check
      _
    $region11: #{tpu_custom_call.1} parent=1 // pred_check_branch
      %43 = sbr.rel (0) target = $region13
    $region12: #{tpu_custom_call.1} parent=1 // pred_region
      %45 = vsyncadd [#allocation6], 0
      %s46 = sshll.u32 %s2, 4
      %s47 = int_to_ptr.hbm [resolvable:$true] %s46
      %s48 = sshll.u32 [#allocation7], 4
      %s49 = int_to_ptr.vmem [resolvable:$true] %s48
      %54 = dma.hbm_to_vmem [thread:$0]  %s47, 2048, %s49, [#allocation6], 128, 128, 8
    $region13: #{tpu_custom_call.1} parent=1 // pred_fallthru
      _
    // Predicated region
    $region14: #{tpu_custom_call.1} parent=1 // pred_check
      _
    $region15: #{tpu_custom_call.1} parent=1 // pred_check_branch
      %56 = sbr.rel (0) target = $region17
    $region16: #{tpu_custom_call.1} parent=1 // pred_region
      _
    $region17: #{tpu_custom_call.1} parent=1 // pred_fallthru
      _
    // Predicated region
    $region18: #{tpu_custom_call.1} parent=1 // pred_check
      _
    $region19: #{tpu_custom_call.1} parent=1 // pred_check_branch
      %58 = sbr.rel (0) target = $region21
    $region20: #{tpu_custom_call.1} parent=1 // pred_region
      %60 = vsyncadd [#allocation9], 0
      %s61 = sshll.u32 %s4, 4
      %s62 = int_to_ptr.hbm [resolvable:$true] %s61
      %s63 = sshll.u32 [#allocation8], 4
      %s64 = int_to_ptr.vmem [resolvable:$true] %s63
      %69 = dma.hbm_to_vmem [thread:$0]  %s62, 2048, %s64, [#allocation9], 128, 128, 8
    $region21: #{tpu_custom_call.1} parent=1 // pred_fallthru
      _
    // Predicated region
    $region22: #{tpu_custom_call.1} parent=1 // pred_check
      _
    $region23: #{tpu_custom_call.1} parent=1 // pred_check_branch
      %71 = sbr.rel (0) target = $region25
    $region24: #{tpu_custom_call.1} parent=1 // pred_region
      _
    $region25: #{tpu_custom_call.1} parent=1 // pred_fallthru
      _
    // Predicated region
    $region26: #{tpu_custom_call.1} parent=1 // pred_check
      _
    $region27: #{tpu_custom_call.1} parent=1 // pred_check_branch
      %73 = sbr.rel (0) target = $region29
    $region28: #{tpu_custom_call.1} parent=1 // pred_region
      %75 = vsyncadd [#allocation9], 0
      %s76 = sshll.u32 %s6, 4
      %s77 = int_to_ptr.hbm [resolvable:$true] %s76
      %s78 = sshll.u32 [#allocation10], 4
      %s79 = int_to_ptr.vmem [resolvable:$true] %s78
      %84 = dma.hbm_to_vmem [thread:$0]  %s77, 2048, %s79, [#allocation9], 128, 128, 8
    $region29: #{tpu_custom_call.1} parent=1 // pred_fallthru
      _
    // Predicated region
    $region30: #{tpu_custom_call.1} parent=1 // pred_check
      _
    $region31: #{tpu_custom_call.1} parent=1 // pred_check_branch
      %86 = sbr.rel (0) target = $region33
    $region32: #{tpu_custom_call.1} parent=1 // pred_region
      _
    $region33: #{tpu_custom_call.1} parent=1 // pred_fallthru
      _
    // Predicated region
    $region34: #{tpu_custom_call.1} parent=1 // pred_check
      _
    $region35: #{tpu_custom_call.1} parent=1 // pred_check_branch
      %88 = sbr.rel (0) target = $region37
    $region36: #{tpu_custom_call.1} parent=1 // pred_region
      %90 = vsyncadd [#allocation12], 0
      %s91 = sshll.u32 %s8, 4
      %s92 = int_to_ptr.hbm [resolvable:$true] %s91
      %s93 = sshll.u32 [#allocation11], 4
      %s94 = int_to_ptr.vmem [resolvable:$true] %s93
      %99 = dma.hbm_to_vmem [thread:$0]  %s92, 2048, %s94, [#allocation12], 128, 128, 8
    $region37: #{tpu_custom_call.1} parent=1 // pred_fallthru
      _
    // Predicated region
    $region38: #{tpu_custom_call.1} parent=1 // pred_check
      _
    $region39: #{tpu_custom_call.1} parent=1 // pred_check_branch
      %101 = sbr.rel (0) target = $region41
    $region40: #{tpu_custom_call.1} parent=1 // pred_region
      _
    $region41: #{tpu_custom_call.1} parent=1 // pred_fallthru
      _
    // Predicated region
    $region42: #{tpu_custom_call.1} parent=1 // pred_check
      _
    $region43: #{tpu_custom_call.1} parent=1 // pred_check_branch
      %103 = sbr.rel (0) target = $region45
    $region44: #{tpu_custom_call.1} parent=1 // pred_region
      %105 = dma.done [#allocation3], 128
    $region45: #{tpu_custom_call.1} parent=1 // pred_fallthru
      _
    // Predicated region
    $region46: #{tpu_custom_call.1} parent=1 // pred_check
      _
    $region47: #{tpu_custom_call.1} parent=1 // pred_check_branch
      %107 = sbr.rel (0) target = $region49
    $region48: #{tpu_custom_call.1} parent=1 // pred_region
      %109 = dma.done [#allocation6], 128
    $region49: #{tpu_custom_call.1} parent=1 // pred_fallthru
      _
    // Predicated region
    $region50: #{tpu_custom_call.1} parent=1 // pred_check
      _
    $region51: #{tpu_custom_call.1} parent=1 // pred_check_branch
      %111 = sbr.rel (0) target = $region53
    $region52: #{tpu_custom_call.1} parent=1 // pred_region
      %113 = dma.done [#allocation6], 2048
    $region53: #{tpu_custom_call.1} parent=1 // pred_fallthru
      _
    // Predicated region
    $region54: #{tpu_custom_call.1} parent=1 // pred_check
      _
    $region55: #{tpu_custom_call.1} parent=1 // pred_check_branch
      %115 = sbr.rel (0) target = $region57
    $region56: #{tpu_custom_call.1} parent=1 // pred_region
      %117 = dma.done [#allocation9], 2048
    $region57: #{tpu_custom_call.1} parent=1 // pred_fallthru
      _
    // Predicated region
    $region58: #{tpu_custom_call.1} parent=1 // pred_check
      _
    $region59: #{tpu_custom_call.1} parent=1 // pred_check_branch
      %119 = sbr.rel (0) target = $region61
    $region60: #{tpu_custom_call.1} parent=1 // pred_region
      %121 = dma.done [#allocation9], 2048
    $region61: #{tpu_custom_call.1} parent=1 // pred_fallthru
      _
    // Predicated region
    $region62: #{tpu_custom_call.1} parent=1 // pred_check
      _
    $region63: #{tpu_custom_call.1} parent=1 // pred_check_branch
      %123 = sbr.rel (0) target = $region65
    $region64: #{tpu_custom_call.1} parent=1 // pred_region
      %125 = dma.done [#allocation12], 2048
    $region65: #{tpu_custom_call.1} parent=1 // pred_fallthru
      _
    %v126 = vld [vmem:[#allocation2] sm:$0xff]
    %v127 = vld [vmem:[#allocation7] sm:$0xff]
    %v128 = vld [vmem:[#allocation7 + $0x8] sm:$0xff]
    %v129 = vld [vmem:[#allocation7 + $0x10] sm:$0xff]
    %v130 = vld [vmem:[#allocation7 + $0x18] sm:$0xff]
    %v131 = vld [vmem:[#allocation7 + $0x20] sm:$0xff]
    %v132 = vld [vmem:[#allocation7 + $0x28] sm:$0xff]
    %v133 = vld [vmem:[#allocation7 + $0x30] sm:$0xff]
    %v134 = vld [vmem:[#allocation7 + $0x38] sm:$0xff]
    %v135 = vld [vmem:[#allocation7 + $0x40] sm:$0xff]
    %v136 = vld [vmem:[#allocation7 + $0x48] sm:$0xff]
    %v137 = vld [vmem:[#allocation7 + $0x50] sm:$0xff]
    %v138 = vld [vmem:[#allocation7 + $0x58] sm:$0xff]
    %v139 = vld [vmem:[#allocation7 + $0x60] sm:$0xff]
    %v140 = vld [vmem:[#allocation7 + $0x68] sm:$0xff]
    %v141 = vld [vmem:[#allocation7 + $0x70] sm:$0xff]
    %v142 = vld [vmem:[#allocation7 + $0x78] sm:$0xff]
    %v143 = vld [vmem:[%s3] sm:$0x1]
    %v145 = vperm.slane %v143, 0
    %147 = vmatpush.msra.mxu0 %v142
    %148 = vmatpush.msra.mxu0 %v141
    %149 = vmatpush.msra.mxu0 %v140
    %150 = vmatpush.msra.mxu0 %v139
    %151 = vmatpush.msra.mxu0 %v138
    %152 = vmatpush.msra.mxu0 %v137
    %153 = vmatpush.msra.mxu0 %v136
    %154 = vmatpush.msra.mxu0 %v135
    %155 = vmatpush.msra.mxu0 %v134
    %156 = vmatpush.msra.mxu0 %v133
    %157 = vmatpush.msra.mxu0 %v132
    %158 = vmatpush.msra.mxu0 %v131
    %159 = vmatpush.msra.mxu0 %v130
    %160 = vmatpush.msra.mxu0 %v129
    %161 = vmatpush.msra.mxu0 %v128
    %162 = vmatpush.msra.mxu0 %v127
    %163 = vmatmul.f32.gmra.mxu0 %v126
    %v164 = vpop.f32.mrf.mxu0
    %v165 = vadd.f32 %v145, %v164
    %166 = vdwg.mxu0
    %v167 = vmax.f32 %v165, 0.0
    %v168 = vld [vmem:[#allocation8] sm:$0xff]
    %v169 = vld [vmem:[#allocation8 + $0x8] sm:$0xff]
    %v170 = vld [vmem:[#allocation8 + $0x10] sm:$0xff]
    %v171 = vld [vmem:[#allocation8 + $0x18] sm:$0xff]
    %v172 = vld [vmem:[#allocation8 + $0x20] sm:$0xff]
    %v173 = vld [vmem:[#allocation8 + $0x28] sm:$0xff]
    %v174 = vld [vmem:[#allocation8 + $0x30] sm:$0xff]
    %v175 = vld [vmem:[#allocation8 + $0x38] sm:$0xff]
    %v176 = vld [vmem:[#allocation8 + $0x40] sm:$0xff]
    %v177 = vld [vmem:[#allocation8 + $0x48] sm:$0xff]
    %v178 = vld [vmem:[#allocation8 + $0x50] sm:$0xff]
    %v179 = vld [vmem:[#allocation8 + $0x58] sm:$0xff]
    %v180 = vld [vmem:[#allocation8 + $0x60] sm:$0xff]
    %v181 = vld [vmem:[#allocation8 + $0x68] sm:$0xff]
    %v182 = vld [vmem:[#allocation8 + $0x70] sm:$0xff]
    %v183 = vld [vmem:[#allocation8 + $0x78] sm:$0xff]
    %v184 = vld [vmem:[%s5] sm:$0x1]
    %v186 = vperm.slane %v184, 0
    %188 = vmatpush.msra.mxu0 %v183
    %189 = vmatpush.msra.mxu0 %v182
    %190 = vmatpush.msra.mxu0 %v181
    %191 = vmatpush.msra.mxu0 %v180
    %192 = vmatpush.msra.mxu0 %v179
    %193 = vmatpush.msra.mxu0 %v178
    %194 = vmatpush.msra.mxu0 %v177
    %195 = vmatpush.msra.mxu0 %v176
    %196 = vmatpush.msra.mxu0 %v175
    %197 = vmatpush.msra.mxu0 %v174
    %198 = vmatpush.msra.mxu0 %v173
    %199 = vmatpush.msra.mxu0 %v172
    %200 = vmatpush.msra.mxu0 %v171
    %201 = vmatpush.msra.mxu0 %v170
    %202 = vmatpush.msra.mxu0 %v169
    %203 = vmatpush.msra.mxu0 %v168
    %204 = vmatmul.f32.gmra.mxu0 %v167
    %v205 = vpop.f32.mrf.mxu0
    %v206 = vadd.f32 %v186, %v205
    %207 = vdwg.mxu0
    %v208 = vmax.f32 %v206, 0.0
    %v209 = vld [vmem:[#allocation5] sm:$0xff]
    %vm210 = vcmp.ge.s32.totalorder %v209, 429496730
    %v211 = vsel %vm210, %v208, 0.0
    %v212 = vld [vmem:[#allocation10] sm:$0xff]
    %v213 = vld [vmem:[#allocation10 + $0x8] sm:$0xff]
    %v214 = vld [vmem:[#allocation10 + $0x10] sm:$0xff]
    %v215 = vld [vmem:[#allocation10 + $0x18] sm:$0xff]
    %v216 = vld [vmem:[#allocation10 + $0x20] sm:$0xff]
    %v217 = vld [vmem:[#allocation10 + $0x28] sm:$0xff]
    %v218 = vld [vmem:[#allocation10 + $0x30] sm:$0xff]
    %v219 = vld [vmem:[#allocation10 + $0x38] sm:$0xff]
    %v220 = vld [vmem:[#allocation10 + $0x40] sm:$0xff]
    %v221 = vld [vmem:[#allocation10 + $0x48] sm:$0xff]
    %v222 = vld [vmem:[#allocation10 + $0x50] sm:$0xff]
    %v223 = vld [vmem:[#allocation10 + $0x58] sm:$0xff]
    %v224 = vld [vmem:[#allocation10 + $0x60] sm:$0xff]
    %v225 = vld [vmem:[#allocation10 + $0x68] sm:$0xff]
    %v226 = vld [vmem:[#allocation10 + $0x70] sm:$0xff]
    %v227 = vld [vmem:[#allocation10 + $0x78] sm:$0xff]
    %v228 = vld [vmem:[%s7] sm:$0x1]
    %v230 = vperm.slane %v228, 0
    %232 = vmatpush.msra.mxu0 %v227
    %233 = vmatpush.msra.mxu0 %v226
    %234 = vmatpush.msra.mxu0 %v225
    %235 = vmatpush.msra.mxu0 %v224
    %236 = vmatpush.msra.mxu0 %v223
    %237 = vmatpush.msra.mxu0 %v222
    %238 = vmatpush.msra.mxu0 %v221
    %239 = vmatpush.msra.mxu0 %v220
    %240 = vmatpush.msra.mxu0 %v219
    %241 = vmatpush.msra.mxu0 %v218
    %242 = vmatpush.msra.mxu0 %v217
    %243 = vmatpush.msra.mxu0 %v216
    %244 = vmatpush.msra.mxu0 %v215
    %245 = vmatpush.msra.mxu0 %v214
    %246 = vmatpush.msra.mxu0 %v213
    %247 = vmatpush.msra.mxu0 %v212
    %248 = vmatmul.f32.gmra.mxu0 %v211
    %v249 = vpop.f32.mrf.mxu0
    %v250 = vadd.f32 %v230, %v249
    %251 = vdwg.mxu0
    %v252 = vmax.f32 %v250, 0.0
    %v253 = vld [vmem:[#allocation11] sm:$0xff]
    %v254 = vld [vmem:[#allocation11 + $0x8] sm:$0xff]
    %v255 = vld [vmem:[#allocation11 + $0x10] sm:$0xff]
    %v256 = vld [vmem:[#allocation11 + $0x18] sm:$0xff]
    %v257 = vld [vmem:[#allocation11 + $0x20] sm:$0xff]
    %v258 = vld [vmem:[#allocation11 + $0x28] sm:$0xff]
    %v259 = vld [vmem:[#allocation11 + $0x30] sm:$0xff]
    %v260 = vld [vmem:[#allocation11 + $0x38] sm:$0xff]
    %v261 = vld [vmem:[#allocation11 + $0x40] sm:$0xff]
    %v262 = vld [vmem:[#allocation11 + $0x48] sm:$0xff]
    %v263 = vld [vmem:[#allocation11 + $0x50] sm:$0xff]
    %v264 = vld [vmem:[#allocation11 + $0x58] sm:$0xff]
    %v265 = vld [vmem:[#allocation11 + $0x60] sm:$0xff]
    %v266 = vld [vmem:[#allocation11 + $0x68] sm:$0xff]
    %v267 = vld [vmem:[#allocation11 + $0x70] sm:$0xff]
    %v268 = vld [vmem:[#allocation11 + $0x78] sm:$0xff]
    %v269 = vld [vmem:[%s9] sm:$0x1]
    %v271 = vperm.slane %v269, 0
    %273 = vmatpush.msra.mxu0 %v268
    %274 = vmatpush.msra.mxu0 %v267
    %275 = vmatpush.msra.mxu0 %v266
    %276 = vmatpush.msra.mxu0 %v265
    %277 = vmatpush.msra.mxu0 %v264
    %278 = vmatpush.msra.mxu0 %v263
    %279 = vmatpush.msra.mxu0 %v262
    %280 = vmatpush.msra.mxu0 %v261
    %281 = vmatpush.msra.mxu0 %v260
    %282 = vmatpush.msra.mxu0 %v259
    %283 = vmatpush.msra.mxu0 %v258
    %284 = vmatpush.msra.mxu0 %v257
    %285 = vmatpush.msra.mxu0 %v256
    %286 = vmatpush.msra.mxu0 %v255
    %287 = vmatpush.msra.mxu0 %v254
    %288 = vmatpush.msra.mxu0 %v253
    %289 = vmatmul.f32.gmra.mxu0 %v252
    %v290 = vpop.f32.mrf.mxu0
    %v291 = vadd.f32 %v271, %v290
    %292 = vdwg.mxu0
    %293 = vst [vmem:[#allocation13] sm:$0xff] %v291
    // Predicated region
    $region66: #{tpu_custom_call.1} parent=1 // pred_check
      _
    $region67: #{tpu_custom_call.1} parent=1 // pred_check_branch
      %295 = sbr.rel (0) target = $region69
    $region68: #{tpu_custom_call.1} parent=1 // pred_region
      %297 = vsyncadd [#allocation4], 0
      %s299 = sshll.u32 [#allocation13], 4
      %s300 = int_to_ptr.vmem [resolvable:$true] %s299
      %s301 = sshll.u32 %s10, 4
      %s302 = int_to_ptr.hbm [resolvable:$true] %s301
      %304 = dma.vmem_to_hbm [thread:$0]  %s300, 128, %s302, [#allocation4]
    $region69: #{tpu_custom_call.1} parent=1 // pred_fallthru
      _
    // Predicated region
    $region70: #{tpu_custom_call.1} parent=1 // pred_check
      _
    $region71: #{tpu_custom_call.1} parent=1 // pred_check_branch
      %306 = sbr.rel (0) target = $region73
    $region72: #{tpu_custom_call.1} parent=1 // pred_region
      %308 = dma.done [#allocation4], 128
    $region73: #{tpu_custom_call.1} parent=1 // pred_fallthru
      _
    %309 = vsyncpa [#allocation3], 1
    %310 = vsyncpa [#allocation6], 1
    %311 = vsyncpa [#allocation9], 1
    %312 = vsyncpa [#allocation12], 1
    %313 = vsyncpa [#allocation4], 1

</llo_original>
